<compile_context>
chip_gen: v7x
topology: tpu7x:2x2x1
jax: 0.10.0
libtpu: 0.0.40
codegen_flags: <defaults>
</compile_context>

<pallas_src>
import jax
import jax.numpy as jnp
from jax import lax
from jax.experimental import pallas as pl
from jax.experimental.pallas import tpu as pltpu

LAMBDA1 = 1.0

_LANES = 128
_SUB = 8
_MAX_CANDS_PER_STEP = 64 * 1024   # candidates per grid step at production N


def _sum_last2(x):
    """Reduce the last two axes (lane then sublane) with keepdims."""
    return jnp.sum(jnp.sum(x, axis=2, keepdims=True), axis=1, keepdims=True)


def _make_tnt_kernel(n_valid, cands_per_step, batch):
    def kernel(p_ref, gt_idx_ref, off_sel_ref, gt_off_ref, out_ref,
               log_acc, psel_acc):
        step = pl.program_id(0)

        @pl.when(step == 0)
        def _init():
            log_acc[...] = jnp.zeros_like(log_acc)
            psel_acc[...] = jnp.zeros_like(psel_acc)

        p = p_ref[...].astype(jnp.float32)                    # (B, SB, 128)
        shp = p.shape
        # Global candidate index of every element of this block.
        sub = lax.broadcasted_iota(jnp.int32, shp, 1)
        lane = lax.broadcasted_iota(jnp.int32, shp, 2)
        cand = step * cands_per_step + sub * _LANES + lane
        valid = cand < n_valid                                # mask wrapper padding
        sel = (cand == gt_idx_ref[...]) & valid               # one-hot mask from gt_idx

        # Single streamed transcendental: clamp(log(1 - p), -100) (torch BCE clamp).
        # TODO(synk): jnp.log1p(-p) would be marginally more accurate as p -> 0.
        log1mp = jnp.maximum(jnp.log(1.0 - p), -100.0)
        log_acc[...] += _sum_last2(jnp.where(valid, log1mp, 0.0))
        psel_acc[...] += _sum_last2(jnp.where(sel, p, 0.0))

        @pl.when(step == pl.num_programs(0) - 1)
        def _finalize():
            # One-hot BCE algebra (exact for strict {0,1} one-hot labels):
            #   cls = -sum_all log(1-p) + sum_b [ log(1-p_sel_b) - log(p_sel_b) ]
            p_sel = psel_acc[...]                             # (B, 1, 1)
            log_psel = jnp.maximum(jnp.log(p_sel), -100.0)
            log1m_psel = jnp.maximum(jnp.log(1.0 - p_sel), -100.0)
            cls_loss = jnp.sum(log1m_psel - log_psel) - jnp.sum(log_acc[...])

            # Smooth-L1 over the 2*B selected-offset scalars (scalar unit).
            off_loss = jnp.float32(0.0)
            for i in range(2 * batch):
                d = off_sel_ref[i] - gt_off_ref[i]
                ad = jnp.maximum(d, -d)
                off_loss = off_loss + jnp.where(ad < 1.0, 0.5 * d * d, ad - 0.5)

            out_ref[1] = cls_loss
            out_ref[2] = off_loss
            out_ref[0] = LAMBDA1 * (cls_loss + off_loss)

    return kernel


def tnt_loss(pred_target_prob, pred_offset, gt_target_prob, gt_offset):
    """pred_target_prob: (B, N) probabilities; pred_offset: (B, N, 2);
       gt_target_prob:   (B, N) one-hot;      gt_offset:   (B, 2)."""
    B, N = pred_target_prob.shape

    # Candidates per grid step: a multiple of 8*128 (dense vregs), big enough to
    # amortize the ~0.35us per-step overhead, small enough that a double-buffered
    # block is trivial in VMEM on v5e / v6e / v7x alike.
    tile = _SUB * _LANES
    if N >= _MAX_CANDS_PER_STEP:
        cn = _MAX_CANDS_PER_STEP
    else:
        cn = ((N + tile - 1) // tile) * tile
    n_pad = ((N + cn - 1) // cn) * cn
    num_steps = n_pad // cn
    sb = cn // _LANES

    p = pred_target_prob
    if n_pad != N:
        # Padded tail is masked out in-kernel; 0.5 keeps log() well-defined.
        # TODO(synk): for large ragged N this pad is an extra HBM copy; handle
        # the final partial block with in-kernel masking only.
        p = jnp.pad(p, ((0, 0), (0, n_pad - N)), constant_values=0.5)
    p3 = p.reshape(B, n_pad // _LANES, _LANES)   # sublane+lane dense layout

    # Scalar-side data: gt index and the B selected offset pairs. Only B*2
    # elements are gathered from pred_offset; the (B,N,2) tensor never streams.
    gt_idx = jnp.argmax(gt_target_prob, axis=1).astype(jnp.int32)        # (B,)
    gt_idx_v = gt_idx.reshape(B, 1, 1)
    off_sel = jnp.take_along_axis(pred_offset, gt_idx[:, None, None], axis=1)
    off_sel = off_sel.reshape(2 * B).astype(jnp.float32)                 # (2B,)
    gt_off = gt_offset.reshape(2 * B).astype(jnp.float32)                # (2B,)

    cost = pl.CostEstimate(
        flops=8 * B * n_pad,
        transcendentals=B * n_pad + 2 * B,
        bytes_accessed=4 * (B * n_pad + B + 4 * B + 3),
    )

    # TODO(synk): on v7x, add a leading size-2 "parallel" grid axis over the
    # candidate range (emit (2,3) partial sums, reduce in the wrapper) to use
    # both TensorCores.
    out = pl.pallas_call(
        _make_tnt_kernel(N, cn, B),
        out_shape=jax.ShapeDtypeStruct((3,), jnp.float32),
        grid_spec=pltpu.PrefetchScalarGridSpec(
            num_scalar_prefetch=0,
            grid=(num_steps,),
            in_specs=[
                pl.BlockSpec((B, sb, _LANES), lambda i: (0, i, 0)),   # p blocks
                pl.BlockSpec((B, 1, 1), lambda i: (0, 0, 0)),         # gt_idx
                pl.BlockSpec(memory_space=pltpu.SMEM),                # off_sel (2B,)
                pl.BlockSpec(memory_space=pltpu.SMEM),                # gt_off  (2B,)
            ],
            out_specs=pl.BlockSpec(memory_space=pltpu.SMEM),          # 3 scalars
            scratch_shapes=[pltpu.VMEM((B, 1, 1), jnp.float32),       # sum log(1-p)
                            pltpu.VMEM((B, 1, 1), jnp.float32)],      # p at gt idx
        ),
        compiler_params=pltpu.CompilerParams(
            dimension_semantics=("arbitrary",)),
        cost_estimate=cost,
    )(p3, gt_idx_v, off_sel, gt_off)

    loss = out[0]
    loss_dict = {"tar_cls_loss": out[1], "tar_offset_loss": out[2]}
    return loss, loss_dict


if __name__ == "__main__":
    key = jax.random.PRNGKey(0)
    B, N = 2, 64  # batch size, number of target candidates
    k1, k2, k3, k4 = jax.random.split(key, 4)

    pred_target_prob = jax.nn.sigmoid(jax.random.normal(k1, (B, N), jnp.float32))
    gt_idx = jax.random.randint(k2, (B,), 0, N)
    gt_target_prob = jax.nn.one_hot(gt_idx, N, dtype=jnp.float32)
    pred_offset = jax.random.normal(k3, (B, N, 2), jnp.float32)
    gt_offset = jax.random.normal(k4, (B, 2), jnp.float32)

    loss, loss_dict = tnt_loss(pred_target_prob, pred_offset,
                               gt_target_prob, gt_offset)
    jax.block_until_ready(loss)

    # Plain-JAX reference check (mirrors the PyTorch semantics).
    bce_ref = -(gt_target_prob * jnp.log(pred_target_prob)
                + (1.0 - gt_target_prob) * jnp.log(1.0 - pred_target_prob))
    cls_ref = bce_ref.sum()
    sel_ref = pred_offset[jnp.arange(B), gt_idx]        # (B, 2)
    d_ref = sel_ref - gt_offset
    ad_ref = jnp.abs(d_ref)
    off_ref_v = jnp.where(ad_ref < 1.0, 0.5 * d_ref * d_ref, ad_ref - 0.5).sum()
    loss_ref = LAMBDA1 * (cls_ref + off_ref_v)

    assert jnp.allclose(loss, loss_ref, rtol=1e-5, atol=1e-4)
    assert jnp.allclose(loss_dict["tar_cls_loss"], cls_ref, rtol=1e-5, atol=1e-4)
    assert jnp.allclose(loss_dict["tar_offset_loss"], off_ref_v, rtol=1e-5, atol=1e-4)

    print("KERNEL_OK")
</pallas_src>

<mosaic_0001>
module attributes {stable_mosaic.version = 11 : i64} {
  func.func @kernel(%arg0: i32, %arg1: memref<2x8x128xf32, #tpu.memory_space<vmem>>, %arg2: memref<2x1x1xi32, #tpu.memory_space<vmem>>, %arg3: memref<4xf32, #tpu.memory_space<smem>>, %arg4: memref<4xf32, #tpu.memory_space<smem>>, %arg5: memref<3xf32, #tpu.memory_space<smem>>, %arg6: memref<2x1x1xf32, #tpu.memory_space<vmem>>, %arg7: memref<2x1x1xf32, #tpu.memory_space<vmem>>) attributes {dimension_semantics = [#tpu.dimension_semantics<arbitrary>], iteration_bounds = array<i64: 1>, scalar_prefetch = 0 : i64, scratch_operands = 2 : i64, tpu.core_type = #tpu.core_type<tc>, window_params = [{transform_indices = @transform_0, window_bounds = array<i64: 2, 8, 128>}, {pipeline_mode = #tpu.pipeline_mode<synchronous>, transform_indices = @transform_1, window_bounds = array<i64: 2, 1, 1>}, {transform_indices = @transform_2, window_bounds = array<i64: 4>}, {transform_indices = @transform_3, window_bounds = array<i64: 4>}, {transform_indices = @transform_4, window_bounds = array<i64: 3>}]} {
    %c0_i32 = arith.constant 0 : i32
    %0 = arith.cmpi eq, %arg0, %c0_i32 : i32
    %1 = arith.extui %0 : i1 to i32
    %c0_i32_0 = arith.constant 0 : i32
    %2 = arith.cmpi ne, %1, %c0_i32_0 : i32
    scf.if %2 {
      %cst_27 = arith.constant 0.000000e+00 : f32
      %44 = vector.broadcast %cst_27 : f32 to vector<2x1x1xf32>
      %c0_28 = arith.constant 0 : index
      %c0_29 = arith.constant 0 : index
      %c0_30 = arith.constant 0 : index
      %45 = vector.load %arg6[%c0_28, %c0_29, %c0_30] : memref<2x1x1xf32, #tpu.memory_space<vmem>>, vector<2x1x1xf32>
      tpu.vector_store %arg6[%c0_28, %c0_29, %c0_30], %44 {strides = array<i32>} : memref<2x1x1xf32, #tpu.memory_space<vmem>>, vector<2x1x1xf32>,
      %cst_31 = arith.constant 0.000000e+00 : f32
      %46 = vector.broadcast %cst_31 : f32 to vector<2x1x1xf32>
      %c0_32 = arith.constant 0 : index
      %c0_33 = arith.constant 0 : index
      %c0_34 = arith.constant 0 : index
      %47 = vector.load %arg7[%c0_32, %c0_33, %c0_34] : memref<2x1x1xf32, #tpu.memory_space<vmem>>, vector<2x1x1xf32>
      tpu.vector_store %arg7[%c0_32, %c0_33, %c0_34], %46 {strides = array<i32>} : memref<2x1x1xf32, #tpu.memory_space<vmem>>, vector<2x1x1xf32>,
    } else {
    }
    %c0 = arith.constant 0 : index
    %c0_1 = arith.constant 0 : index
    %c0_2 = arith.constant 0 : index
    %3 = vector.load %arg1[%c0, %c0_1, %c0_2] : memref<2x8x128xf32, #tpu.memory_space<vmem>>, vector<2x8x128xf32>
    %4 = tpu.iota {dimensions = array<i32: 1>} : vector<2x8x128xi32>
    %5 = tpu.iota {dimensions = array<i32: 2>} : vector<2x8x128xi32>
    %c1024_i32 = arith.constant 1024 : i32
    %6 = arith.muli %arg0, %c1024_i32 : i32
    %c128_i32 = arith.constant 128 : i32
    %7 = vector.broadcast %c128_i32 : i32 to vector<2x8x128xi32>
    %8 = arith.muli %4, %7 : vector<2x8x128xi32>
    %9 = vector.broadcast %6 : i32 to vector<2x8x128xi32>
    %10 = arith.addi %9, %8 : vector<2x8x128xi32>
    %11 = arith.addi %10, %5 : vector<2x8x128xi32>
    %c64_i32 = arith.constant 64 : i32
    %12 = vector.broadcast %c64_i32 : i32 to vector<2x8x128xi32>
    %13 = arith.cmpi slt, %11, %12 : vector<2x8x128xi32>
    %c0_3 = arith.constant 0 : index
    %c0_4 = arith.constant 0 : index
    %c0_5 = arith.constant 0 : index
    %14 = vector.load %arg2[%c0_3, %c0_4, %c0_5] : memref<2x1x1xi32, #tpu.memory_space<vmem>>, vector<2x1x1xi32>
    %15 = vector.broadcast %14 : vector<2x1x1xi32> to vector<2x8x128xi32>
    %16 = arith.cmpi eq, %11, %15 : vector<2x8x128xi32>
    %17 = arith.andi %16, %13 : vector<2x8x128xi1>
    %cst = arith.constant 1.000000e+00 : f32
    %18 = vector.broadcast %cst : f32 to vector<2x8x128xf32>
    %19 = arith.subf %18, %3 : vector<2x8x128xf32>
    %20 = math.log %19 : vector<2x8x128xf32>
    %cst_6 = arith.constant -1.000000e+02 : f32
    %21 = vector.broadcast %cst_6 : f32 to vector<2x8x128xf32>
    %22 = arith.maximumf %20, %21 : vector<2x8x128xf32>
    %c0_7 = arith.constant 0 : index
    %c0_8 = arith.constant 0 : index
    %c0_9 = arith.constant 0 : index
    %23 = vector.load %arg6[%c0_7, %c0_8, %c0_9] : memref<2x1x1xf32, #tpu.memory_space<vmem>>, vector<2x1x1xf32>
    %cst_10 = arith.constant 0.000000e+00 : f32
    %24 = vector.broadcast %cst_10 : f32 to vector<2x8x128xf32>
    %25 = arith.select %13, %22, %24 : vector<2x8x128xi1>, vector<2x8x128xf32>
    %cst_11 = arith.constant dense<0.000000e+00> : vector<2x8xf32>
    %26 = vector.multi_reduction <add>, %25, %cst_11 [2] : vector<2x8x128xf32> to vector<2x8xf32>
    %27 = vector.shape_cast %26 : vector<2x8xf32> to vector<2x8x1xf32>
    %cst_12 = arith.constant dense<0.000000e+00> : vector<2x1xf32>
    %28 = vector.multi_reduction <add>, %27, %cst_12 [1] : vector<2x8x1xf32> to vector<2x1xf32>
    %29 = vector.shape_cast %28 : vector<2x1xf32> to vector<2x1x1xf32>
    %30 = arith.addf %23, %29 : vector<2x1x1xf32>
    %c0_13 = arith.constant 0 : index
    %c0_14 = arith.constant 0 : index
    %c0_15 = arith.constant 0 : index
    %31 = vector.load %arg6[%c0_13, %c0_14, %c0_15] : memref<2x1x1xf32, #tpu.memory_space<vmem>>, vector<2x1x1xf32>
    tpu.vector_store %arg6[%c0_13, %c0_14, %c0_15], %30 {strides = array<i32>} : memref<2x1x1xf32, #tpu.memory_space<vmem>>, vector<2x1x1xf32>,
    %c0_16 = arith.constant 0 : index
    %c0_17 = arith.constant 0 : index
    %c0_18 = arith.constant 0 : index
    %32 = vector.load %arg7[%c0_16, %c0_17, %c0_18] : memref<2x1x1xf32, #tpu.memory_space<vmem>>, vector<2x1x1xf32>
    %cst_19 = arith.constant 0.000000e+00 : f32
    %33 = vector.broadcast %cst_19 : f32 to vector<2x8x128xf32>
    %34 = arith.select %17, %3, %33 : vector<2x8x128xi1>, vector<2x8x128xf32>
    %cst_20 = arith.constant dense<0.000000e+00> : vector<2x8xf32>
    %35 = vector.multi_reduction <add>, %34, %cst_20 [2] : vector<2x8x128xf32> to vector<2x8xf32>
    %36 = vector.shape_cast %35 : vector<2x8xf32> to vector<2x8x1xf32>
    %cst_21 = arith.constant dense<0.000000e+00> : vector<2x1xf32>
    %37 = vector.multi_reduction <add>, %36, %cst_21 [1] : vector<2x8x1xf32> to vector<2x1xf32>
    %38 = vector.shape_cast %37 : vector<2x1xf32> to vector<2x1x1xf32>
    %39 = arith.addf %32, %38 : vector<2x1x1xf32>
    %c0_22 = arith.constant 0 : index
    %c0_23 = arith.constant 0 : index
    %c0_24 = arith.constant 0 : index
    %40 = vector.load %arg7[%c0_22, %c0_23, %c0_24] : memref<2x1x1xf32, #tpu.memory_space<vmem>>, vector<2x1x1xf32>
    tpu.vector_store %arg7[%c0_22, %c0_23, %c0_24], %39 {strides = array<i32>} : memref<2x1x1xf32, #tpu.memory_space<vmem>>, vector<2x1x1xf32>,
    %c0_i32_25 = arith.constant 0 : i32
    %41 = arith.cmpi eq, %arg0, %c0_i32_25 : i32
    %42 = arith.extui %41 : i1 to i32
    %c0_i32_26 = arith.constant 0 : i32
    %43 = arith.cmpi ne, %42, %c0_i32_26 : i32
    scf.if %43 {
      %c0_27 = arith.constant 0 : index
      %c0_28 = arith.constant 0 : index
      %c0_29 = arith.constant 0 : index
      %44 = vector.load %arg7[%c0_27, %c0_28, %c0_29] : memref<2x1x1xf32, #tpu.memory_space<vmem>>, vector<2x1x1xf32>
      %45 = math.log %44 : vector<2x1x1xf32>
      %cst_30 = arith.constant -1.000000e+02 : f32
      %46 = vector.broadcast %cst_30 : f32 to vector<2x1x1xf32>
      %47 = arith.maximumf %45, %46 : vector<2x1x1xf32>
      %cst_31 = arith.constant 1.000000e+00 : f32
      %48 = vector.broadcast %cst_31 : f32 to vector<2x1x1xf32>
      %49 = arith.subf %48, %44 : vector<2x1x1xf32>
      %50 = math.log %49 : vector<2x1x1xf32>
      %cst_32 = arith.constant -1.000000e+02 : f32
      %51 = vector.broadcast %cst_32 : f32 to vector<2x1x1xf32>
      %52 = arith.maximumf %50, %51 : vector<2x1x1xf32>
      %53 = arith.subf %52, %47 : vector<2x1x1xf32>
      %54 = vector.shape_cast %53 : vector<2x1x1xf32> to vector<1x2x1x1xf32>
      %cst_33 = arith.constant dense<0.000000e+00> : vector<1xf32>
      %55 = vector.multi_reduction <add>, %54, %cst_33 [1, 2, 3] : vector<1x2x1x1xf32> to vector<1xf32>
      %56 = vector.shape_cast %55 : vector<1xf32> to vector<1x1x1x1xf32>
      %57 = vector.extract %56[0, 0, 0, 0] : f32 from vector<1x1x1x1xf32>
      %c0_34 = arith.constant 0 : index
      %c0_35 = arith.constant 0 : index
      %c0_36 = arith.constant 0 : index
      %58 = vector.load %arg6[%c0_34, %c0_35, %c0_36] : memref<2x1x1xf32, #tpu.memory_space<vmem>>, vector<2x1x1xf32>
      %59 = vector.shape_cast %58 : vector<2x1x1xf32> to vector<1x2x1x1xf32>
      %cst_37 = arith.constant dense<0.000000e+00> : vector<1xf32>
      %60 = vector.multi_reduction <add>, %59, %cst_37 [1, 2, 3] : vector<1x2x1x1xf32> to vector<1xf32>
      %61 = vector.shape_cast %60 : vector<1xf32> to vector<1x1x1x1xf32>
      %62 = vector.extract %61[0, 0, 0, 0] : f32 from vector<1x1x1x1xf32>
      %63 = arith.subf %57, %62 : f32
      %c0_38 = arith.constant 0 : index
      %64 = memref.load %arg3[%c0_38] : memref<4xf32, #tpu.memory_space<smem>>
      %c0_39 = arith.constant 0 : index
      %65 = memref.load %arg4[%c0_39] : memref<4xf32, #tpu.memory_space<smem>>
      %66 = arith.subf %64, %65 : f32
      %cst_40 = arith.constant 0.000000e+00 : f32
      %67 = arith.subf %cst_40, %66 : f32
      %68 = arith.maximumf %66, %67 : f32
      %cst_41 = arith.constant 1.000000e+00 : f32
      %69 = arith.cmpf olt, %68, %cst_41 : f32
      %cst_42 = arith.constant 5.000000e-01 : f32
      %70 = arith.mulf %cst_42, %66 : f32
      %71 = arith.mulf %70, %66 : f32
      %cst_43 = arith.constant 5.000000e-01 : f32
      %72 = arith.subf %68, %cst_43 : f32
      %73 = arith.select %69, %71, %72 : f32
      %cst_44 = arith.constant 0.000000e+00 : f32
      %74 = arith.addf %cst_44, %73 : f32
      %c1 = arith.constant 1 : index
      %75 = memref.load %arg3[%c1] : memref<4xf32, #tpu.memory_space<smem>>
      %c1_45 = arith.constant 1 : index
      %76 = memref.load %arg4[%c1_45] : memref<4xf32, #tpu.memory_space<smem>>
      %77 = arith.subf %75, %76 : f32
      %cst_46 = arith.constant 0.000000e+00 : f32
      %78 = arith.subf %cst_46, %77 : f32
      %79 = arith.maximumf %77, %78 : f32
      %cst_47 = arith.constant 1.000000e+00 : f32
      %80 = arith.cmpf olt, %79, %cst_47 : f32
      %cst_48 = arith.constant 5.000000e-01 : f32
      %81 = arith.mulf %cst_48, %77 : f32
      %82 = arith.mulf %81, %77 : f32
      %cst_49 = arith.constant 5.000000e-01 : f32
      %83 = arith.subf %79, %cst_49 : f32
      %84 = arith.select %80, %82, %83 : f32
      %85 = arith.addf %74, %84 : f32
      %c2 = arith.constant 2 : index
      %86 = memref.load %arg3[%c2] : memref<4xf32, #tpu.memory_space<smem>>
      %c2_50 = arith.constant 2 : index
      %87 = memref.load %arg4[%c2_50] : memref<4xf32, #tpu.memory_space<smem>>
      %88 = arith.subf %86, %87 : f32
      %cst_51 = arith.constant 0.000000e+00 : f32
      %89 = arith.subf %cst_51, %88 : f32
      %90 = arith.maximumf %88, %89 : f32
      %cst_52 = arith.constant 1.000000e+00 : f32
      %91 = arith.cmpf olt, %90, %cst_52 : f32
      %cst_53 = arith.constant 5.000000e-01 : f32
      %92 = arith.mulf %cst_53, %88 : f32
      %93 = arith.mulf %92, %88 : f32
      %cst_54 = arith.constant 5.000000e-01 : f32
      %94 = arith.subf %90, %cst_54 : f32
      %95 = arith.select %91, %93, %94 : f32
      %96 = arith.addf %85, %95 : f32
      %c3 = arith.constant 3 : index
      %97 = memref.load %arg3[%c3] : memref<4xf32, #tpu.memory_space<smem>>
      %c3_55 = arith.constant 3 : index
      %98 = memref.load %arg4[%c3_55] : memref<4xf32, #tpu.memory_space<smem>>
      %99 = arith.subf %97, %98 : f32
      %cst_56 = arith.constant 0.000000e+00 : f32
      %100 = arith.subf %cst_56, %99 : f32
      %101 = arith.maximumf %99, %100 : f32
      %cst_57 = arith.constant 1.000000e+00 : f32
      %102 = arith.cmpf olt, %101, %cst_57 : f32
      %cst_58 = arith.constant 5.000000e-01 : f32
      %103 = arith.mulf %cst_58, %99 : f32
      %104 = arith.mulf %103, %99 : f32
      %cst_59 = arith.constant 5.000000e-01 : f32
      %105 = arith.subf %101, %cst_59 : f32
      %106 = arith.select %102, %104, %105 : f32
      %107 = arith.addf %96, %106 : f32
      %c1_60 = arith.constant 1 : index
      %108 = memref.load %arg5[%c1_60] : memref<3xf32, #tpu.memory_space<smem>>
      memref.store %63, %arg5[%c1_60] : memref<3xf32, #tpu.memory_space<smem>>
      %c2_61 = arith.constant 2 : index
      %109 = memref.load %arg5[%c2_61] : memref<3xf32, #tpu.memory_space<smem>>
      memref.store %107, %arg5[%c2_61] : memref<3xf32, #tpu.memory_space<smem>>
      %110 = arith.addf %63, %107 : f32
      %cst_62 = arith.constant 1.000000e+00 : f32
      %111 = arith.mulf %cst_62, %110 : f32
      %c0_63 = arith.constant 0 : index
      %112 = memref.load %arg5[%c0_63] : memref<3xf32, #tpu.memory_space<smem>>
      memref.store %111, %arg5[%c0_63] : memref<3xf32, #tpu.memory_space<smem>>
    } else {
    }
    return
  }
  func.func @transform_0(%arg0: i32) -> (i32, i32, i32) {
    %c0_i32 = arith.constant 0 : i32
    %c0_i32_0 = arith.constant 0 : i32
    %c0_i32_1 = arith.constant 0 : i32
    return %c0_i32, %arg0, %c0_i32_0 : i32, i32, i32
  }
  func.func @transform_1(%arg0: i32) -> (i32, i32, i32) {
    %c0_i32 = arith.constant 0 : i32
    %c0_i32_0 = arith.constant 0 : i32
    %c0_i32_1 = arith.constant 0 : i32
    %c0_i32_2 = arith.constant 0 : i32
    return %c0_i32, %c0_i32_0, %c0_i32_1 : i32, i32, i32
  }
  func.func @transform_2(%arg0: i32) -> i32 {
    %c0_i32 = arith.constant 0 : i32
    %c0_i32_0 = arith.constant 0 : i32
    return %c0_i32 : i32
  }
  func.func @transform_3(%arg0: i32) -> i32 {
    %c0_i32 = arith.constant 0 : i32
    %c0_i32_0 = arith.constant 0 : i32
    return %c0_i32 : i32
  }
  func.func @transform_4(%arg0: i32) -> i32 {
    %c0_i32 = arith.constant 0 : i32
    %c0_i32_0 = arith.constant 0 : i32
    return %c0_i32 : i32
  }
}

</mosaic_0001>

<llo_original>
// kernel: tpu_custom_call.1
$region0: #{tpu_custom_call.1}
  #allocation0 [shape = 'u32[]', space=smem, size = 0x4, offset = 0x4, fixed_abs, tag = 'smem constant byte address 0x4 - core index']
  #allocation1 [shape = 'u32[144,128]{1,0:T(1,128)}', space=vmem, size = 0x12000, scoped, tag = 'internal scratch']
  #allocation2 [shape = 'f32[2,1,1]{2,1,0:T(1,128)}', space=vmem, size = 0x400, scoped, tag = 'scratch operand']
  #allocation3 [shape = 'f32[2,1,1]{2,1,0:T(1,128)}', space=vmem, size = 0x400, scoped, tag = 'scratch operand']
  %s0 = inlined_call_operand.hbm [shape: f32[2,8,128], index: 0, kind: input, shape index: {}]
  %s1 = inlined_call_operand.vmem [shape: s32[2,1,1], index: 1, kind: input, shape index: {}]
  %s2 = inlined_call_operand.vmem [shape: f32[4], index: 2, kind: input, shape index: {}]
  %s3 = inlined_call_operand.vmem [shape: f32[4], index: 3, kind: input, shape index: {}]
  %s4 = inlined_call_operand.hbm [shape: f32[3], index: 4, kind: output, shape index: {}]
  %s5 = sld [smem:[#allocation0]]
  $region46: #{tpu_custom_call.1} parent=0
    _
  %s7 = ssub.s32 1, %s5
  %s8 = scalar_select 0, %s7, %s5
  $region1: #{tpu_custom_call.1} parent=0
    #allocation4 [shape = 'u8[8192]{0}', space=vmem, size = 0x2000, scoped, tag = 'input window, operand 0, single buffered']
    #allocation5 [shape = 's32[1]{0}', space=sflag, size = 0x4, scoped, tag = 'scoped memory for tpu_custom_call.1']
    #allocation6 [shape = 's32[1]{0}', space=sflag, size = 0x4, scoped, tag = 'scoped memory for tpu_custom_call.1']
    #allocation7 [shape = 's32[1]{0}', space=sflag, size = 0x4, scoped, tag = 'scoped memory for tpu_custom_call.1']
    #allocation8 [shape = 'u8[512]{0}', space=smem, size = 0x200, scoped, tag = 'input window, operand 2, single buffered']
    #allocation9 [shape = 'u8[512]{0}', space=smem, size = 0x200, scoped, tag = 'input window, operand 3, single buffered']
    #allocation10 [shape = 's32[1]{0}', space=sflag, size = 0x4, scoped, tag = 'scoped memory for tpu_custom_call.1']
    #allocation11 [shape = 'u8[512]{0}', space=smem, size = 0x200, scoped, tag = 'output window, operand 0, single buffered']
    %9 = vsyncpa [#allocation5], 0
    %10 = vsyncpa [#allocation7], 0
    %11 = vsyncpa [#allocation10], 0
    %12 = vsyncpa [#allocation6], 0
    // Predicated region
    $region2: #{tpu_custom_call.1} parent=1 // pred_check
      _
    $region3: #{tpu_custom_call.1} parent=1 // pred_check_branch
      %14 = sbr.rel (0) target = $region5
    $region4: #{tpu_custom_call.1} parent=1 // pred_region
      %s16 = ssub.s32 256, 256
      %17 = vsyncadd [#allocation5], %s16
      %s18 = sshll.u32 [#allocation4], 4
      %s19 = int_to_ptr.vmem [resolvable:$true] %s18
      %24 = dma.hbm_to_vmem [thread:$0]  %s0, 256, %s19, [#allocation5], 128, 128, 8
    $region5: #{tpu_custom_call.1} parent=1 // pred_fallthru
      _
    // Predicated region
    $region6: #{tpu_custom_call.1} parent=1 // pred_check
      _
    $region7: #{tpu_custom_call.1} parent=1 // pred_check_branch
      %26 = sbr.rel (0) target = $region9
    $region8: #{tpu_custom_call.1} parent=1 // pred_region
      _
    $region9: #{tpu_custom_call.1} parent=1 // pred_fallthru
      _
    // Predicated region
    $region10: #{tpu_custom_call.1} parent=1 // pred_check
      _
    $region11: #{tpu_custom_call.1} parent=1 // pred_check_branch
      %28 = sbr.rel (0) target = $region13
    $region12: #{tpu_custom_call.1} parent=1 // pred_region
      %s30 = ssub.s32 16, 16
      %31 = vsyncadd [#allocation7], %s30
      %s33 = sshll.u32 %s2, 4
      %s34 = int_to_ptr.vmem [resolvable:$true] %s33
      %36 = dma.vmem_to_smem %s34, 16, [#allocation8], [#allocation7]
    $region13: #{tpu_custom_call.1} parent=1 // pred_fallthru
      _
    // Predicated region
    $region14: #{tpu_custom_call.1} parent=1 // pred_check
      _
    $region15: #{tpu_custom_call.1} parent=1 // pred_check_branch
      %38 = sbr.rel (0) target = $region17
    $region16: #{tpu_custom_call.1} parent=1 // pred_region
      %s40 = ssub.s32 16, 16
      %41 = vsyncadd [#allocation10], %s40
      %s43 = sshll.u32 %s3, 4
      %s44 = int_to_ptr.vmem [resolvable:$true] %s43
      %46 = dma.vmem_to_smem %s44, 16, [#allocation9], [#allocation10]
    $region17: #{tpu_custom_call.1} parent=1 // pred_fallthru
      _
    // Predicated region
    $region18: #{tpu_custom_call.1} parent=1 // pred_check
      _
    $region19: #{tpu_custom_call.1} parent=1 // pred_check_branch
      %48 = sbr.rel (0) target = $region21
    $region20: #{tpu_custom_call.1} parent=1 // pred_region
      %49 = dma.done [#allocation5], 256
    $region21: #{tpu_custom_call.1} parent=1 // pred_fallthru
      _
    // Predicated region
    $region22: #{tpu_custom_call.1} parent=1 // pred_check
      _
    $region23: #{tpu_custom_call.1} parent=1 // pred_check_branch
      %51 = sbr.rel (0) target = $region25
    $region24: #{tpu_custom_call.1} parent=1 // pred_region
      %52 = dma.done [#allocation7], 16
    $region25: #{tpu_custom_call.1} parent=1 // pred_fallthru
      _
    // Predicated region
    $region26: #{tpu_custom_call.1} parent=1 // pred_check
      _
    $region27: #{tpu_custom_call.1} parent=1 // pred_check_branch
      %54 = sbr.rel (0) target = $region29
    $region28: #{tpu_custom_call.1} parent=1 // pred_region
      %55 = dma.done [#allocation10], 16
    $region29: #{tpu_custom_call.1} parent=1 // pred_fallthru
      _
    %56 = sfence
    %p57 = scmp.eq.s32.totalorder 0, 0
    // Predicated region
    $region30: #{tpu_custom_call.1} parent=1 // pred_check
      %p58 = pneg %p57
    $region31: #{tpu_custom_call.1} parent=1 // pred_check_branch
      %60 = sbr.rel (%p58) target = $region33
    $region32: #{tpu_custom_call.1} parent=1 // pred_region
      %vm61 = vcmask 0
      %62 = vst.msk [vmem:[#allocation2] sm:$0x1] %vm61, 0.0
      %63 = vst.msk [vmem:[#allocation2 + $0x1] sm:$0x1] %vm61, 0.0
      %64 = vst.msk [vmem:[#allocation3] sm:$0x1] %vm61, 0.0
      %65 = vst.msk [vmem:[#allocation3 + $0x1] sm:$0x1] %vm61, 0.0
    $region33: #{tpu_custom_call.1} parent=1 // pred_fallthru
      _
    %v66 = vld [vmem:[#allocation4] sm:$0xff]
    %v67 = vld [vmem:[#allocation4 + $0x8] sm:$0xff]
    %v68 = vlaneseq
    %v69 = vshrl.u32 %v68, 7
    %v70 = vlaneseq
    %v71 = vand.u32 %v70, 127
    %s72 = smul.u32 0, 1024
    %v73 = vmul.u32 %v69, 128
    %v74 = vstv %s72
    %v75 = vadd.s32 %v74, %v73
    %v76 = vadd.s32 %v75, %v71
    %vm77 = vcmp.lt.s32.totalorder %v76, 64
    %v78 = vld [vmem:[%s1] sm:$0x1]
    %v79 = vld [vmem:[%s1 + $0x1] sm:$0x1]
    %v80 = vlaneseq
    %v81 = vshrl.u32 %v80, 7
    %v82 = vsub.s32 0, %v81
    %v83 = vrot.slane %v78, %v82
    %v84 = vlaneseq
    %v85 = vshrl.u32 %v84, 7
    %v86 = vsub.s32 0, %v85
    %v87 = vrot.slane %v79, %v86
    %88 = vset.pattern.permute.xlu0 0
    %89 = vperm.xlu0 %88, %v83
    %v90 = vpop.permute.xlu0 %89
    %91 = vset.pattern.permute.xlu0 0
    %92 = vperm.xlu0 %91, %v87
    %v93 = vpop.permute.xlu0 %92
    %vm94 = vcmp.eq.s32.totalorder %v76, %v90
    %vm95 = vcmp.eq.s32.totalorder %v76, %v93
    %vm96 = vmand %vm94, %vm77
    %vm97 = vmand %vm95, %vm77
    %v98 = vsub.f32 1.0, %v66
    %v99 = vsub.f32 1.0, %v67
    %v100 = vlog2.pop %v98
    %v101 = vmul.f32 %v100, 0.6931472
    %v102 = vlog2.pop %v99
    %v103 = vmul.f32 %v102, 0.6931472
    %v104 = vmax.f32 %v101, -100.0
    %v105 = vmax.f32 %v103, -100.0
    %v106 = vld [vmem:[#allocation2] sm:$0x1]
    %v107 = vld [vmem:[#allocation2 + $0x1] sm:$0x1]
    %v108 = vsel %vm77, %v104, 0.0
    %v109 = vsel %vm77, %v105, 0.0
    %110 = vadd.xlane.f32.xlu0 %v108
    %v111 = vpop.xlane.xlu0 %110
    %112 = vadd.xlane.f32.xlu0 %v109
    %v113 = vpop.xlane.xlu0 %112
    %v114 = vrot.slane %v111, 4
    %v115 = vadd.f32 %v111, %v114
    %v116 = vrot.slane %v115, 2
    %v117 = vadd.f32 %v115, %v116
    %v118 = vrot.slane %v117, 1
    %v119 = vadd.f32 %v117, %v118
    %v120 = vrot.slane %v113, 4
    %v121 = vadd.f32 %v113, %v120
    %v122 = vrot.slane %v121, 2
    %v123 = vadd.f32 %v121, %v122
    %v124 = vrot.slane %v123, 1
    %v125 = vadd.f32 %v123, %v124
    %v126 = vadd.f32 %v106, %v119
    %v127 = vadd.f32 %v107, %v125
    %vm128 = vcmask 0
    %129 = vst.msk [vmem:[#allocation2] sm:$0x1] %vm128, %v126
    %130 = vst.msk [vmem:[#allocation2 + $0x1] sm:$0x1] %vm128, %v127
    %v131 = vld [vmem:[#allocation3] sm:$0x1]
    %v132 = vld [vmem:[#allocation3 + $0x1] sm:$0x1]
    %v133 = vsel %vm96, %v66, 0.0
    %v134 = vsel %vm97, %v67, 0.0
    %135 = vadd.xlane.f32.xlu0 %v133
    %v136 = vpop.xlane.xlu0 %135
    %137 = vadd.xlane.f32.xlu0 %v134
    %v138 = vpop.xlane.xlu0 %137
    %v139 = vrot.slane %v136, 4
    %v140 = vadd.f32 %v136, %v139
    %v141 = vrot.slane %v140, 2
    %v142 = vadd.f32 %v140, %v141
    %v143 = vrot.slane %v142, 1
    %v144 = vadd.f32 %v142, %v143
    %v145 = vrot.slane %v138, 4
    %v146 = vadd.f32 %v138, %v145
    %v147 = vrot.slane %v146, 2
    %v148 = vadd.f32 %v146, %v147
    %v149 = vrot.slane %v148, 1
    %v150 = vadd.f32 %v148, %v149
    %v151 = vadd.f32 %v131, %v144
    %v152 = vadd.f32 %v132, %v150
    %153 = vst.msk [vmem:[#allocation3] sm:$0x1] %vm128, %v151
    %154 = vst.msk [vmem:[#allocation3 + $0x1] sm:$0x1] %vm128, %v152
    // Predicated region
    $region34: #{tpu_custom_call.1} parent=1 // pred_check
      %p155 = pneg %p57
    $region35: #{tpu_custom_call.1} parent=1 // pred_check_branch
      %157 = sbr.rel (%p155) target = $region37
    $region36: #{tpu_custom_call.1} parent=1 // pred_region
      %v158 = vld [vmem:[#allocation3] sm:$0x1]
      %v159 = vld [vmem:[#allocation3 + $0x1] sm:$0x1]
      %v160 = vlog2.pop %v158
      %v161 = vmul.f32 %v160, 0.6931472
      %v162 = vlog2.pop %v159
      %v163 = vmul.f32 %v162, 0.6931472
      %v164 = vmax.f32 %v161, -100.0
      %v165 = vmax.f32 %v163, -100.0
      %v166 = vsub.f32 1.0, %v158
      %v167 = vsub.f32 1.0, %v159
      %v168 = vlog2.pop %v166
      %v169 = vmul.f32 %v168, 0.6931472
      %v170 = vlog2.pop %v167
      %v171 = vmul.f32 %v170, 0.6931472
      %v172 = vmax.f32 %v169, -100.0
      %v173 = vmax.f32 %v171, -100.0
      %v174 = vsub.f32 %v172, %v164
      %v175 = vsub.f32 %v173, %v165
      %v176 = vsel %vm128, %v174, 0.0
      %v177 = vsel %vm128, %v175, 0.0
      %v178 = vadd.f32 %v176, %v177
      %179 = vadd.xlane.f32.xlu0 %v178
      %v180 = vpop.xlane.xlu0 %179
      %v181 = vrot.slane %v180, 4
      %v182 = vadd.f32 %v180, %v181
      %v183 = vrot.slane %v182, 2
      %v184 = vadd.f32 %v182, %v183
      %v185 = vrot.slane %v184, 1
      %v186 = vadd.f32 %v184, %v185
      %s187 = vtos %v186
      %v188 = vld [vmem:[#allocation2] sm:$0x1]
      %v189 = vld [vmem:[#allocation2 + $0x1] sm:$0x1]
      %v190 = vsel %vm128, %v188, 0.0
      %v191 = vsel %vm128, %v189, 0.0
      %v192 = vadd.f32 %v190, %v191
      %193 = vadd.xlane.f32.xlu0 %v192
      %v194 = vpop.xlane.xlu0 %193
      %v195 = vrot.slane %v194, 4
      %v196 = vadd.f32 %v194, %v195
      %v197 = vrot.slane %v196, 2
      %v198 = vadd.f32 %v196, %v197
      %v199 = vrot.slane %v198, 1
      %v200 = vadd.f32 %v198, %v199
      %s201 = vtos %v200
      %s202 = ssub.f32 %s187, %s201
      %s203 = sld [smem:[#allocation8]]
      %s204 = sld [smem:[#allocation9]]
      %s205 = ssub.f32 %s203, %s204
      %s206 = ssub.f32 0.0, %s205
      %s207 = smax.f32 %s205, %s206
      %p208 = scmp.lt.f32.partialorder %s207, 1.0
      %s209 = smul.f32 %s205, 0.5
      %s210 = smul.f32 %s209, %s205
      %s211 = ssub.f32 %s207, 0.5
      %s212 = scalar_select %p208, %s210, %s211
      %s213 = sadd.f32 %s212, 0.0
      %s214 = sld [smem:[#allocation8 + $0x1]]
      %s215 = sld [smem:[#allocation9 + $0x1]]
      %s216 = ssub.f32 %s214, %s215
      %s217 = ssub.f32 0.0, %s216
      %s218 = smax.f32 %s216, %s217
      %p219 = scmp.lt.f32.partialorder %s218, 1.0
      %s220 = smul.f32 %s216, 0.5
      %s221 = smul.f32 %s220, %s216
      %s222 = ssub.f32 %s218, 0.5
      %s223 = scalar_select %p219, %s221, %s222
      %s224 = sadd.f32 %s213, %s223
      %s225 = sld [smem:[#allocation8 + $0x2]]
      %s226 = sld [smem:[#allocation9 + $0x2]]
      %s227 = ssub.f32 %s225, %s226
      %s228 = ssub.f32 0.0, %s227
      %s229 = smax.f32 %s227, %s228
      %p230 = scmp.lt.f32.partialorder %s229, 1.0
      %s231 = smul.f32 %s227, 0.5
      %s232 = smul.f32 %s231, %s227
      %s233 = ssub.f32 %s229, 0.5
      %s234 = scalar_select %p230, %s232, %s233
      %s235 = sadd.f32 %s224, %s234
      %s236 = sld [smem:[#allocation8 + $0x3]]
      %s237 = sld [smem:[#allocation9 + $0x3]]
      %s238 = ssub.f32 %s236, %s237
      %s239 = ssub.f32 0.0, %s238
      %s240 = smax.f32 %s238, %s239
      %p241 = scmp.lt.f32.partialorder %s240, 1.0
      %s242 = smul.f32 %s238, 0.5
      %s243 = smul.f32 %s242, %s238
      %s244 = ssub.f32 %s240, 0.5
      %s245 = scalar_select %p241, %s243, %s244
      %s246 = sadd.f32 %s235, %s245
      %s247 = scalar_lea.smem [#allocation11], 1
      %248 = sst [smem:[%s247]] %s202
      %s249 = scalar_lea.smem [#allocation11], 2
      %250 = sst [smem:[%s249]] %s246
      %s251 = sadd.f32 %s202, %s246
      %s252 = scalar_lea.smem [#allocation11], 0
      %253 = sst [smem:[%s252]] %s251
    $region37: #{tpu_custom_call.1} parent=1 // pred_fallthru
      _
    // Predicated region
    $region38: #{tpu_custom_call.1} parent=1 // pred_check
      _
    $region39: #{tpu_custom_call.1} parent=1 // pred_check_branch
      %255 = sbr.rel (0) target = $region41
    $region40: #{tpu_custom_call.1} parent=1 // pred_region
      %s257 = ssub.s32 16, 16
      %258 = vsyncadd [#allocation6], %s257
      %261 = dma.smem_to_hbm [#allocation11], 16, %s4, [#allocation6]
    $region41: #{tpu_custom_call.1} parent=1 // pred_fallthru
      _
    // Predicated region
    $region42: #{tpu_custom_call.1} parent=1 // pred_check
      _
    $region43: #{tpu_custom_call.1} parent=1 // pred_check_branch
      %263 = sbr.rel (0) target = $region45
    $region44: #{tpu_custom_call.1} parent=1 // pred_region
      %264 = dma.done [#allocation6], 16
    $region45: #{tpu_custom_call.1} parent=1 // pred_fallthru
      _
    %265 = sfence
    %266 = vsyncpa [#allocation5], 1
    %267 = vsyncpa [#allocation6], 1
    %268 = vsyncpa [#allocation7], 1
    %269 = vsyncpa [#allocation10], 1

</llo_original>
